<compile_context>
chip_gen: v5e
topology: v5e:2x2
jax: 0.10.0
libtpu: 0.0.40
codegen_flags: <defaults>
</compile_context>

<pallas_src>
import jax
import jax.numpy as jnp
from jax.experimental import pallas as pl
from jax.experimental.pallas import tpu as pltpu

LANE = 128


def _round_up(n, m):
    return ((n + m - 1) // m) * m


# --------------------------------------------------------------------------
# Kernel body: relu(x @ W1^T + b1) @ W2^T + b2, fully fused.
# --------------------------------------------------------------------------
def readout_kernel(x_ref, w1_ref, b1_ref, w2_ref, b2_ref, o_ref):
    # Cast activations to the MXU compute dtype (bf16) in-kernel (VPU op),
    # so x is streamed from HBM exactly once, in its native f32.
    x = x_ref[...].astype(w1_ref.dtype)
    # Layer 1 on the MXU with f32 accumulation.
    h = jnp.dot(x, w1_ref[...], preferred_element_type=jnp.float32)
    # Bias + ReLU in f32 on the VPU (safe on v5e: no bf16 VPU there).
    h = jnp.maximum(h + b1_ref[...], 0.0)
    # Layer 2: logits.
    out = jnp.dot(h.astype(w2_ref.dtype), w2_ref[...],
                  preferred_element_type=jnp.float32)
    o_ref[...] = (out + b2_ref[...]).astype(o_ref.dtype)


# --------------------------------------------------------------------------
# One-time (init-time) parameter prep: transpose, lane-pad, cast.
# Call this ONCE when the readout is built, not per forward.
# --------------------------------------------------------------------------
def prepare_readout_params(w1, b1, w2, b2, *, compute_dtype=jnp.bfloat16):
    """w1: (HID, IN), b1: (HID,), w2: (NCLS, HID), b2: (NCLS,) -- nn.Linear layout."""
    HID, IN = w1.shape
    NCLS = w2.shape[0]
    HID_P = _round_up(HID, LANE)     # lane-full hidden dim
    NCLS_P = _round_up(NCLS, LANE)   # lane-dense output -> unmasked stores

    w1_t = jnp.zeros((IN, HID_P), compute_dtype).at[:, :HID].set(
        w1.T.astype(compute_dtype))
    b1_p = jnp.zeros((1, HID_P), jnp.float32).at[:, :HID].set(b1)
    w2_t = jnp.zeros((HID_P, NCLS_P), compute_dtype).at[:HID, :NCLS].set(
        w2.T.astype(compute_dtype))
    b2_p = jnp.zeros((1, NCLS_P), jnp.float32).at[:, :NCLS].set(b2)

    return {"w1": w1_t, "b1": b1_p, "w2": w2_t, "b2": b2_p, "ncls": NCLS}


def _pick_tm(B):
    """Row-tile: coarse (single step) for small/moderate B; >=2 steps for
    large B so the parallel axis can shard across v7x's 2 TensorCores."""
    if B < 16:
        return B                      # full-dim block (exempt from 8/128 rule)
    if B <= 512:
        return (B // 16) * 16         # largest 16-aligned tile <= B
    return min(_round_up(pl.cdiv(B, 2), 16), 1024)


def _vmem_bytes(tm, IN, HID_P, NCLS_P, out_bytes, const_bufs):
    x_tile = 2 * tm * IN * 4                                  # double-buffered f32
    o_tile = 2 * tm * NCLS_P * out_bytes
    weights = const_bufs * ((IN * HID_P + HID_P * NCLS_P) * 2
                            + (HID_P + NCLS_P) * 4)
    temps = tm * (HID_P + NCLS_P) * 4                         # f32 intermediates
    return x_tile + o_tile + weights + temps


# --------------------------------------------------------------------------
# Forward: x (B, IN) f32  ->  logits (B, NCLS)
# --------------------------------------------------------------------------
def variable_readout_forward(x, params, *, tm=None, out_dtype=jnp.bfloat16):
    B, IN = x.shape
    w1_c, b1_p, w2_c, b2_p = params["w1"], params["b1"], params["w2"], params["b2"]
    NCLS = params["ncls"]
    HID_P = w1_c.shape[1]
    NCLS_P = w2_c.shape[1]
    assert w1_c.shape[0] == IN, "input feature dim mismatch with prepared params"

    out_bytes = jnp.dtype(out_dtype).itemsize
    if tm is None:
        tm = _pick_tm(B)
    # Keep the VMEM footprint within a budget that is safe on every generation
    # (v7x has only 64 MiB per TensorCore); shrink tm if needed.
    budget = 36 << 20
    while tm > 16 and _vmem_bytes(tm, IN, HID_P, NCLS_P, out_bytes, 2) > budget:
        tm = max(16, _round_up(tm // 2, 16))
    need = _vmem_bytes(tm, IN, HID_P, NCLS_P, out_bytes, 2)
    vmem_limit = int(min(max(2 * need, 32 << 20), 60 << 20))

    grid = (pl.cdiv(B, tm),)   # ragged edge block handled by Pallas masking

    def _call(single_buffer_consts):
        const_kw = ({"pipeline_mode": pl.Buffered(1)}
                    if single_buffer_consts else {})
        in_specs = [
            pl.BlockSpec((tm, IN), lambda i: (i, 0)),                    # x rows
            pl.BlockSpec((IN, HID_P), lambda i: (0, 0), **const_kw),     # W1^T
            pl.BlockSpec((1, HID_P), lambda i: (0, 0), **const_kw),      # b1
            pl.BlockSpec((HID_P, NCLS_P), lambda i: (0, 0), **const_kw), # W2^T
            pl.BlockSpec((1, NCLS_P), lambda i: (0, 0), **const_kw),     # b2
        ]
        return pl.pallas_call(
            readout_kernel,
            out_shape=jax.ShapeDtypeStruct((B, NCLS_P), out_dtype),
            grid_spec=pltpu.PrefetchScalarGridSpec(
                num_scalar_prefetch=0,
                grid=grid,
                in_specs=in_specs,
                out_specs=pl.BlockSpec((tm, NCLS_P), lambda i: (i, 0)),
            ),
            compiler_params=pltpu.CompilerParams(
                dimension_semantics=("parallel",),
                vmem_limit_bytes=vmem_limit),
        )(x, w1_c, b1_p, w2_c, b2_p)

    try:
        out = _call(True)           # single-buffer the resident weights/biases
    except Exception:
        out = _call(False)          # fall back to default buffering

    return out[:, :NCLS]


def reference_forward(x, w1, b1, w2, b2):
    h = jnp.maximum(x @ w1.T + b1, 0.0)
    return h @ w2.T + b2


if __name__ == "__main__":
    # Small shapes consistent with a reservoir readout head.
    B, IN, HID, NCLS = 128, 32, 64, 10

    key = jax.random.PRNGKey(0)
    kx, kw1, kb1, kw2, kb2 = jax.random.split(key, 5)

    x = jax.random.normal(kx, (B, IN), dtype=jnp.float32)

    # PyTorch nn.Linear layout: W is (out, in).
    w1 = jax.random.normal(kw1, (HID, IN), dtype=jnp.float32) * (1.0 / jnp.sqrt(IN))
    b1 = jax.random.normal(kb1, (HID,), dtype=jnp.float32) * 0.01
    w2 = jax.random.normal(kw2, (NCLS, HID), dtype=jnp.float32) * (1.0 / jnp.sqrt(HID))
    b2 = jax.random.normal(kb2, (NCLS,), dtype=jnp.float32) * 0.01

    # One-time init-time prep (hoisted out of the forward hot path).
    params = prepare_readout_params(w1, b1, w2, b2)
    params = {k: (jax.block_until_ready(v) if isinstance(v, jax.Array) else v)
              for k, v in params.items()}

    y = variable_readout_forward(x, params)
    y = jax.block_until_ready(y)

    y_ref = reference_forward(x, w1, b1, w2, b2)
    assert y.shape == (B, NCLS)
    # bf16 matmul operands + bf16 output store (f32 accumulation) -> loosened tol.
    assert jnp.allclose(y.astype(jnp.float32), y_ref, atol=5e-2, rtol=5e-2), \
        "mismatch vs reference"

    # TODO(synk): the .fit() training loop (AdamW + CrossEntropyLoss, early
    # stopping) is host-side training logic, not part of the forward hot path.
    print("KERNEL_OK")
</pallas_src>

<mosaic_0001>
module attributes {stable_mosaic.version = 11 : i64} {
  func.func @readout_kernel(%arg0: i32, %arg1: memref<128x32xf32, #tpu.memory_space<vmem>>, %arg2: memref<32x128xbf16, #tpu.memory_space<vmem>>, %arg3: memref<1x128xf32, #tpu.memory_space<vmem>>, %arg4: memref<128x128xbf16, #tpu.memory_space<vmem>>, %arg5: memref<1x128xf32, #tpu.memory_space<vmem>>, %arg6: memref<128x128xbf16, #tpu.memory_space<vmem>>) attributes {dimension_semantics = [#tpu.dimension_semantics<parallel>], iteration_bounds = array<i64: 1>, scalar_prefetch = 0 : i64, scratch_operands = 0 : i64, tpu.core_type = #tpu.core_type<tc>, window_params = [{transform_indices = @transform_0, window_bounds = array<i64: 128, 32>}, {pipeline_mode = #tpu.pipeline_mode<synchronous>, transform_indices = @transform_1, window_bounds = array<i64: 32, 128>}, {pipeline_mode = #tpu.pipeline_mode<synchronous>, transform_indices = @transform_2, window_bounds = array<i64: 1, 128>}, {pipeline_mode = #tpu.pipeline_mode<synchronous>, transform_indices = @transform_3, window_bounds = array<i64: 128, 128>}, {pipeline_mode = #tpu.pipeline_mode<synchronous>, transform_indices = @transform_4, window_bounds = array<i64: 1, 128>}, {transform_indices = @transform_5, window_bounds = array<i64: 128, 128>}]} {
    %c0 = arith.constant 0 : index
    %c0_0 = arith.constant 0 : index
    %0 = vector.load %arg1[%c0, %c0_0] : memref<128x32xf32, #tpu.memory_space<vmem>>, vector<128x32xf32>
    %1 = arith.truncf %0 : vector<128x32xf32> to vector<128x32xbf16>
    %c0_1 = arith.constant 0 : index
    %c0_2 = arith.constant 0 : index
    %2 = vector.load %arg2[%c0_1, %c0_2] : memref<32x128xbf16, #tpu.memory_space<vmem>>, vector<32x128xbf16>
    %cst = arith.constant dense<0.000000e+00> : vector<128x128xf32>
    %3 = tpu.matmul %1, %2, %cst {dimension_numbers = #tpu.dot_dimension_numbers<[1], [0], [0], [1], [0, 0, 1, 1], [], []>} : vector<128x32xbf16>, vector<32x128xbf16>, vector<128x128xf32> -> vector<128x128xf32>
    %c0_3 = arith.constant 0 : index
    %c0_4 = arith.constant 0 : index
    %4 = vector.load %arg3[%c0_3, %c0_4] : memref<1x128xf32, #tpu.memory_space<vmem>>, vector<1x128xf32>
    %5 = vector.broadcast %4 : vector<1x128xf32> to vector<128x128xf32>
    %6 = arith.addf %3, %5 : vector<128x128xf32>
    %cst_5 = arith.constant 0.000000e+00 : f32
    %7 = vector.broadcast %cst_5 : f32 to vector<128x128xf32>
    %8 = arith.maximumf %6, %7 : vector<128x128xf32>
    %9 = arith.truncf %8 : vector<128x128xf32> to vector<128x128xbf16>
    %c0_6 = arith.constant 0 : index
    %c0_7 = arith.constant 0 : index
    %10 = vector.load %arg4[%c0_6, %c0_7] : memref<128x128xbf16, #tpu.memory_space<vmem>>, vector<128x128xbf16>
    %cst_8 = arith.constant dense<0.000000e+00> : vector<128x128xf32>
    %11 = tpu.matmul %9, %10, %cst_8 {dimension_numbers = #tpu.dot_dimension_numbers<[1], [0], [0], [1], [0, 0, 1, 1], [], []>} : vector<128x128xbf16>, vector<128x128xbf16>, vector<128x128xf32> -> vector<128x128xf32>
    %c0_9 = arith.constant 0 : index
    %c0_10 = arith.constant 0 : index
    %12 = vector.load %arg5[%c0_9, %c0_10] : memref<1x128xf32, #tpu.memory_space<vmem>>, vector<1x128xf32>
    %13 = vector.broadcast %12 : vector<1x128xf32> to vector<128x128xf32>
    %14 = arith.addf %11, %13 : vector<128x128xf32>
    %15 = arith.truncf %14 : vector<128x128xf32> to vector<128x128xbf16>
    %c0_11 = arith.constant 0 : index
    %c0_12 = arith.constant 0 : index
    %16 = vector.load %arg6[%c0_11, %c0_12] : memref<128x128xbf16, #tpu.memory_space<vmem>>, vector<128x128xbf16>
    tpu.vector_store %arg6[%c0_11, %c0_12], %15 {strides = array<i32>} : memref<128x128xbf16, #tpu.memory_space<vmem>>, vector<128x128xbf16>,
    return
  }
  func.func @transform_0(%arg0: i32) -> (i32, i32) {
    %c0_i32 = arith.constant 0 : i32
    %c0_i32_0 = arith.constant 0 : i32
    return %arg0, %c0_i32 : i32, i32
  }
  func.func @transform_1(%arg0: i32) -> (i32, i32) {
    %c0_i32 = arith.constant 0 : i32
    %c0_i32_0 = arith.constant 0 : i32
    %c0_i32_1 = arith.constant 0 : i32
    return %c0_i32, %c0_i32_0 : i32, i32
  }
  func.func @transform_2(%arg0: i32) -> (i32, i32) {
    %c0_i32 = arith.constant 0 : i32
    %c0_i32_0 = arith.constant 0 : i32
    %c0_i32_1 = arith.constant 0 : i32
    return %c0_i32, %c0_i32_0 : i32, i32
  }
  func.func @transform_3(%arg0: i32) -> (i32, i32) {
    %c0_i32 = arith.constant 0 : i32
    %c0_i32_0 = arith.constant 0 : i32
    %c0_i32_1 = arith.constant 0 : i32
    return %c0_i32, %c0_i32_0 : i32, i32
  }
  func.func @transform_4(%arg0: i32) -> (i32, i32) {
    %c0_i32 = arith.constant 0 : i32
    %c0_i32_0 = arith.constant 0 : i32
    %c0_i32_1 = arith.constant 0 : i32
    return %c0_i32, %c0_i32_0 : i32, i32
  }
  func.func @transform_5(%arg0: i32) -> (i32, i32) {
    %c0_i32 = arith.constant 0 : i32
    %c0_i32_0 = arith.constant 0 : i32
    return %arg0, %c0_i32 : i32, i32
  }
}

module attributes {stable_mosaic.version = 11 : i64} {
  func.func @readout_kernel(%arg0: i32, %arg1: memref<128x32xf32, #tpu.memory_space<vmem>>, %arg2: memref<32x128xbf16, #tpu.memory_space<vmem>>, %arg3: memref<1x128xf32, #tpu.memory_space<vmem>>, %arg4: memref<128x128xbf16, #tpu.memory_space<vmem>>, %arg5: memref<1x128xf32, #tpu.memory_space<vmem>>, %arg6: memref<128x128xbf16, #tpu.memory_space<vmem>>) attributes {dimension_semantics = [#tpu.dimension_semantics<parallel>], iteration_bounds = array<i64: 1>, scalar_prefetch = 0 : i64, scratch_operands = 0 : i64, tpu.core_type = #tpu.core_type<tc>, window_params = [{transform_indices = @transform_0, window_bounds = array<i64: 128, 32>}, {pipeline_mode = #tpu.pipeline_mode<synchronous>, transform_indices = @transform_1, window_bounds = array<i64: 32, 128>}, {pipeline_mode = #tpu.pipeline_mode<synchronous>, transform_indices = @transform_2, window_bounds = array<i64: 1, 128>}, {pipeline_mode = #tpu.pipeline_mode<synchronous>, transform_indices = @transform_3, window_bounds = array<i64: 128, 128>}, {pipeline_mode = #tpu.pipeline_mode<synchronous>, transform_indices = @transform_4, window_bounds = array<i64: 1, 128>}, {transform_indices = @transform_5, window_bounds = array<i64: 128, 128>}]} {
    %c0 = arith.constant 0 : index
    %c0_0 = arith.constant 0 : index
    %0 = vector.load %arg1[%c0, %c0_0] : memref<128x32xf32, #tpu.memory_space<vmem>>, vector<128x32xf32>
    %1 = arith.truncf %0 : vector<128x32xf32> to vector<128x32xbf16>
    %c0_1 = arith.constant 0 : index
    %c0_2 = arith.constant 0 : index
    %2 = vector.load %arg2[%c0_1, %c0_2] : memref<32x128xbf16, #tpu.memory_space<vmem>>, vector<32x128xbf16>
    %cst = arith.constant dense<0.000000e+00> : vector<128x128xf32>
    %3 = tpu.matmul %1, %2, %cst {dimension_numbers = #tpu.dot_dimension_numbers<[1], [0], [0], [1], [0, 0, 1, 1], [], []>} : vector<128x32xbf16>, vector<32x128xbf16>, vector<128x128xf32> -> vector<128x128xf32>
    %c0_3 = arith.constant 0 : index
    %c0_4 = arith.constant 0 : index
    %4 = vector.load %arg3[%c0_3, %c0_4] : memref<1x128xf32, #tpu.memory_space<vmem>>, vector<1x128xf32>
    %5 = vector.broadcast %4 : vector<1x128xf32> to vector<128x128xf32>
    %6 = arith.addf %3, %5 : vector<128x128xf32>
    %cst_5 = arith.constant 0.000000e+00 : f32
    %7 = vector.broadcast %cst_5 : f32 to vector<128x128xf32>
    %8 = arith.maximumf %6, %7 : vector<128x128xf32>
    %9 = arith.truncf %8 : vector<128x128xf32> to vector<128x128xbf16>
    %c0_6 = arith.constant 0 : index
    %c0_7 = arith.constant 0 : index
    %10 = vector.load %arg4[%c0_6, %c0_7] : memref<128x128xbf16, #tpu.memory_space<vmem>>, vector<128x128xbf16>
    %cst_8 = arith.constant dense<0.000000e+00> : vector<128x128xf32>
    %11 = tpu.matmul %9, %10, %cst_8 {dimension_numbers = #tpu.dot_dimension_numbers<[1], [0], [0], [1], [0, 0, 1, 1], [], []>} : vector<128x128xbf16>, vector<128x128xbf16>, vector<128x128xf32> -> vector<128x128xf32>
    %c0_9 = arith.constant 0 : index
    %c0_10 = arith.constant 0 : index
    %12 = vector.load %arg5[%c0_9, %c0_10] : memref<1x128xf32, #tpu.memory_space<vmem>>, vector<1x128xf32>
    %13 = vector.broadcast %12 : vector<1x128xf32> to vector<128x128xf32>
    %14 = arith.addf %11, %13 : vector<128x128xf32>
    %15 = arith.truncf %14 : vector<128x128xf32> to vector<128x128xbf16>
    %c0_11 = arith.constant 0 : index
    %c0_12 = arith.constant 0 : index
    %16 = vector.load %arg6[%c0_11, %c0_12] : memref<128x128xbf16, #tpu.memory_space<vmem>>, vector<128x128xbf16>
    tpu.vector_store %arg6[%c0_11, %c0_12], %15 {strides = array<i32>} : memref<128x128xbf16, #tpu.memory_space<vmem>>, vector<128x128xbf16>,
    return
  }
  func.func @transform_0(%arg0: i32) -> (i32, i32) {
    %c0_i32 = arith.constant 0 : i32
    %c0_i32_0 = arith.constant 0 : i32
    return %arg0, %c0_i32 : i32, i32
  }
  func.func @transform_1(%arg0: i32) -> (i32, i32) {
    %c0_i32 = arith.constant 0 : i32
    %c0_i32_0 = arith.constant 0 : i32
    %c0_i32_1 = arith.constant 0 : i32
    return %c0_i32, %c0_i32_0 : i32, i32
  }
  func.func @transform_2(%arg0: i32) -> (i32, i32) {
    %c0_i32 = arith.constant 0 : i32
    %c0_i32_0 = arith.constant 0 : i32
    %c0_i32_1 = arith.constant 0 : i32
    return %c0_i32, %c0_i32_0 : i32, i32
  }
  func.func @transform_3(%arg0: i32) -> (i32, i32) {
    %c0_i32 = arith.constant 0 : i32
    %c0_i32_0 = arith.constant 0 : i32
    %c0_i32_1 = arith.constant 0 : i32
    return %c0_i32, %c0_i32_0 : i32, i32
  }
  func.func @transform_4(%arg0: i32) -> (i32, i32) {
    %c0_i32 = arith.constant 0 : i32
    %c0_i32_0 = arith.constant 0 : i32
    %c0_i32_1 = arith.constant 0 : i32
    return %c0_i32, %c0_i32_0 : i32, i32
  }
  func.func @transform_5(%arg0: i32) -> (i32, i32) {
    %c0_i32 = arith.constant 0 : i32
    %c0_i32_0 = arith.constant 0 : i32
    return %arg0, %c0_i32 : i32, i32
  }
}

</mosaic_0001>

<llo_original>
// kernel: tpu_custom_call.1
$region0: #{tpu_custom_call.1}
  #allocation0 [shape = 'u32[]', space=smem, size = 0x4, offset = 0x4, fixed_abs, tag = 'smem constant byte address 0x4 - core index']
  #allocation1 [shape = 'u32[72,128]{1,0:T(1,128)}', space=vmem, size = 0x9000, scoped, tag = 'internal scratch']
  %s0 = inlined_call_operand.vmem [shape: f32[128,32], index: 0, kind: input, shape index: {}]
  %s1 = inlined_call_operand.vmem [shape: bf16[32,128], index: 1, kind: input, shape index: {}]
  %s2 = inlined_call_operand.vmem [shape: f32[1,128], index: 2, kind: input, shape index: {}]
  %s3 = inlined_call_operand.vmem [shape: bf16[128,128], index: 3, kind: input, shape index: {}]
  %s4 = inlined_call_operand.vmem [shape: f32[1,128], index: 4, kind: input, shape index: {}]
  %s5 = inlined_call_operand.hbm [shape: bf16[128,128], index: 5, kind: output, shape index: {}]
  %s6 = sld [smem:[#allocation0]]
  $region30: #{tpu_custom_call.1} parent=0
    _
  %s8 = ssub.s32 1, %s6
  %s9 = scalar_select 0, %s8, %s6
  $region1: #{tpu_custom_call.1} parent=0
    #allocation2 [shape = 'u8[32768]{0}', space=vmem, size = 0x8000, scoped, tag = 'output window, operand 0, single buffered']
    #allocation3 [shape = 's32[1]{0}', space=sflag, size = 0x4, scoped, tag = 'scoped memory for tpu_custom_call.1']
    %10 = vsyncpa [#allocation3], 0
    // Predicated region
    $region2: #{tpu_custom_call.1} parent=1 // pred_check
      _
    $region3: #{tpu_custom_call.1} parent=1 // pred_check_branch
      %12 = sbr.rel (0) target = $region5
    $region4: #{tpu_custom_call.1} parent=1 // pred_region
      _
    $region5: #{tpu_custom_call.1} parent=1 // pred_fallthru
      _
    // Predicated region
    $region6: #{tpu_custom_call.1} parent=1 // pred_check
      _
    $region7: #{tpu_custom_call.1} parent=1 // pred_check_branch
      %14 = sbr.rel (0) target = $region9
    $region8: #{tpu_custom_call.1} parent=1 // pred_region
      _
    $region9: #{tpu_custom_call.1} parent=1 // pred_fallthru
      _
    // Predicated region
    $region10: #{tpu_custom_call.1} parent=1 // pred_check
      _
    $region11: #{tpu_custom_call.1} parent=1 // pred_check_branch
      %16 = sbr.rel (0) target = $region13
    $region12: #{tpu_custom_call.1} parent=1 // pred_region
      _
    $region13: #{tpu_custom_call.1} parent=1 // pred_fallthru
      _
    // Predicated region
    $region14: #{tpu_custom_call.1} parent=1 // pred_check
      _
    $region15: #{tpu_custom_call.1} parent=1 // pred_check_branch
      %18 = sbr.rel (0) target = $region17
    $region16: #{tpu_custom_call.1} parent=1 // pred_region
      _
    $region17: #{tpu_custom_call.1} parent=1 // pred_fallthru
      _
    // Predicated region
    $region18: #{tpu_custom_call.1} parent=1 // pred_check
      _
    $region19: #{tpu_custom_call.1} parent=1 // pred_check_branch
      %20 = sbr.rel (0) target = $region21
    $region20: #{tpu_custom_call.1} parent=1 // pred_region
      _
    $region21: #{tpu_custom_call.1} parent=1 // pred_fallthru
      _
    %v22 = vld [vmem:[%s0] sm:$0xff]
    %v23 = vld [vmem:[%s0 + $0x8] sm:$0xff]
    %v24 = vld [vmem:[%s0 + $0x10] sm:$0xff]
    %v25 = vld [vmem:[%s0 + $0x18] sm:$0xff]
    %v26 = vld [vmem:[%s0 + $0x20] sm:$0xff]
    %v27 = vld [vmem:[%s0 + $0x28] sm:$0xff]
    %v28 = vld [vmem:[%s0 + $0x30] sm:$0xff]
    %v29 = vld [vmem:[%s0 + $0x38] sm:$0xff]
    %v30 = vld [vmem:[%s0 + $0x40] sm:$0xff]
    %v31 = vld [vmem:[%s0 + $0x48] sm:$0xff]
    %v32 = vld [vmem:[%s0 + $0x50] sm:$0xff]
    %v33 = vld [vmem:[%s0 + $0x58] sm:$0xff]
    %v34 = vld [vmem:[%s0 + $0x60] sm:$0xff]
    %v35 = vld [vmem:[%s0 + $0x68] sm:$0xff]
    %v36 = vld [vmem:[%s0 + $0x70] sm:$0xff]
    %v37 = vld [vmem:[%s0 + $0x78] sm:$0xff]
    %v38 = vpack.c.bf16 %v23, %v22
    %v39 = vpack.c.bf16 %v25, %v24
    %v40 = vpack.c.bf16 %v27, %v26
    %v41 = vpack.c.bf16 %v29, %v28
    %v42 = vpack.c.bf16 %v31, %v30
    %v43 = vpack.c.bf16 %v33, %v32
    %v44 = vpack.c.bf16 %v35, %v34
    %v45 = vpack.c.bf16 %v37, %v36
    %v46 = vld [vmem:[%s1] sm:$0xf]
    %v47 = vld [vmem:[%s1 + $0x4] sm:$0xf]
    %v48 = vld [vmem:[%s1 + $0x8] sm:$0xf]
    %v49 = vld [vmem:[%s1 + $0xc] sm:$0xf]
    %v50 = vld [vmem:[%s2] sm:$0x1]
    %v52 = vperm.slane %v50, 0
    %v58 = vunpack.c.l.b16 %v46
    %v59 = vunpack.c.l.b16 %v47
    %v60 = vunpack.c.l.b16 %v48
    %v61 = vunpack.c.l.b16 %v49
    %v62 = vpack.c.b16 %v59, %v58
    %v63 = vpack.c.b16 %v61, %v60
    %vm66 = vcmask 261120
    %v68 = vsel %vm66, %v38, 0
    %v71 = vsel %vm66, %v39, 0
    %v74 = vsel %vm66, %v40, 0
    %v77 = vsel %vm66, %v41, 0
    %v80 = vsel %vm66, %v42, 0
    %v83 = vsel %vm66, %v43, 0
    %v86 = vsel %vm66, %v44, 0
    %v89 = vsel %vm66, %v45, 0
    %91 = vmatpush.bf16.msra.mxu0 0
    %92 = vmatpush.bf16.msra.mxu0 0
    %93 = vmatpush.bf16.msra.mxu0 0
    %94 = vmatpush.bf16.msra.mxu0 0
    %95 = vmatpush.bf16.msra.mxu0 0
    %96 = vmatpush.bf16.msra.mxu0 0
    %97 = vmatpush.bf16.msra.mxu0 %v63
    %98 = vmatpush.bf16.msra.mxu0 %v62
    %99 = vmatmul.bf16.gmra.mxu0 %v68
    %v100 = vpop.f32.mrf.mxu0
    %v101 = vadd.f32 %v52, %v100
    %v102 = vpop.f32.mrf.mxu0
    %v103 = vadd.f32 %v52, %v102
    %104 = vmatmul.bf16.gmra.mxu0 %v71
    %v105 = vpop.f32.mrf.mxu0
    %v106 = vadd.f32 %v52, %v105
    %v107 = vpop.f32.mrf.mxu0
    %v108 = vadd.f32 %v52, %v107
    %109 = vmatmul.bf16.gmra.mxu0 %v74
    %v110 = vpop.f32.mrf.mxu0
    %v111 = vadd.f32 %v52, %v110
    %v112 = vpop.f32.mrf.mxu0
    %v113 = vadd.f32 %v52, %v112
    %114 = vmatmul.bf16.gmra.mxu0 %v77
    %v115 = vpop.f32.mrf.mxu0
    %v116 = vadd.f32 %v52, %v115
    %v117 = vpop.f32.mrf.mxu0
    %v118 = vadd.f32 %v52, %v117
    %119 = vmatmul.bf16.gmra.mxu0 %v80
    %v120 = vpop.f32.mrf.mxu0
    %v121 = vadd.f32 %v52, %v120
    %v122 = vpop.f32.mrf.mxu0
    %v123 = vadd.f32 %v52, %v122
    %124 = vmatmul.bf16.gmra.mxu0 %v83
    %v125 = vpop.f32.mrf.mxu0
    %v126 = vadd.f32 %v52, %v125
    %v127 = vpop.f32.mrf.mxu0
    %v128 = vadd.f32 %v52, %v127
    %129 = vmatmul.bf16.gmra.mxu0 %v86
    %v130 = vpop.f32.mrf.mxu0
    %v131 = vadd.f32 %v52, %v130
    %v132 = vpop.f32.mrf.mxu0
    %v133 = vadd.f32 %v52, %v132
    %134 = vmatmul.bf16.gmra.mxu0 %v89
    %v135 = vpop.f32.mrf.mxu0
    %v136 = vadd.f32 %v52, %v135
    %v137 = vpop.f32.mrf.mxu0
    %v138 = vadd.f32 %v52, %v137
    %139 = vdwg.mxu0
    %v140 = vmax.f32 %v101, 0.0
    %v141 = vmax.f32 %v103, 0.0
    %v142 = vmax.f32 %v106, 0.0
    %v143 = vmax.f32 %v108, 0.0
    %v144 = vmax.f32 %v111, 0.0
    %v145 = vmax.f32 %v113, 0.0
    %v146 = vmax.f32 %v116, 0.0
    %v147 = vmax.f32 %v118, 0.0
    %v148 = vmax.f32 %v121, 0.0
    %v149 = vmax.f32 %v123, 0.0
    %v150 = vmax.f32 %v126, 0.0
    %v151 = vmax.f32 %v128, 0.0
    %v152 = vmax.f32 %v131, 0.0
    %v153 = vmax.f32 %v133, 0.0
    %v154 = vmax.f32 %v136, 0.0
    %v155 = vmax.f32 %v138, 0.0
    %v156 = vpack.c.bf16 %v141, %v140
    %v157 = vpack.c.bf16 %v143, %v142
    %v158 = vpack.c.bf16 %v145, %v144
    %v159 = vpack.c.bf16 %v147, %v146
    %v160 = vpack.c.bf16 %v149, %v148
    %v161 = vpack.c.bf16 %v151, %v150
    %v162 = vpack.c.bf16 %v153, %v152
    %v163 = vpack.c.bf16 %v155, %v154
    %v164 = vld [vmem:[%s3] sm:$0xf]
    %v165 = vld [vmem:[%s3 + $0x4] sm:$0xf]
    %v166 = vld [vmem:[%s3 + $0x8] sm:$0xf]
    %v167 = vld [vmem:[%s3 + $0xc] sm:$0xf]
    %v168 = vld [vmem:[%s3 + $0x10] sm:$0xf]
    %v169 = vld [vmem:[%s3 + $0x14] sm:$0xf]
    %v170 = vld [vmem:[%s3 + $0x18] sm:$0xf]
    %v171 = vld [vmem:[%s3 + $0x1c] sm:$0xf]
    %v172 = vld [vmem:[%s3 + $0x20] sm:$0xf]
    %v173 = vld [vmem:[%s3 + $0x24] sm:$0xf]
    %v174 = vld [vmem:[%s3 + $0x28] sm:$0xf]
    %v175 = vld [vmem:[%s3 + $0x2c] sm:$0xf]
    %v176 = vld [vmem:[%s3 + $0x30] sm:$0xf]
    %v177 = vld [vmem:[%s3 + $0x34] sm:$0xf]
    %v178 = vld [vmem:[%s3 + $0x38] sm:$0xf]
    %v179 = vld [vmem:[%s3 + $0x3c] sm:$0xf]
    %v180 = vld [vmem:[%s4] sm:$0x1]
    %v182 = vperm.slane %v180, 0
    %v200 = vunpack.c.l.b16 %v164
    %v201 = vunpack.c.l.b16 %v165
    %v202 = vunpack.c.l.b16 %v166
    %v203 = vunpack.c.l.b16 %v167
    %v204 = vunpack.c.l.b16 %v168
    %v205 = vunpack.c.l.b16 %v169
    %v206 = vunpack.c.l.b16 %v170
    %v207 = vunpack.c.l.b16 %v171
    %v208 = vunpack.c.l.b16 %v172
    %v209 = vunpack.c.l.b16 %v173
    %v210 = vunpack.c.l.b16 %v174
    %v211 = vunpack.c.l.b16 %v175
    %v212 = vunpack.c.l.b16 %v176
    %v213 = vunpack.c.l.b16 %v177
    %v214 = vunpack.c.l.b16 %v178
    %v215 = vunpack.c.l.b16 %v179
    %v216 = vpack.c.b16 %v201, %v200
    %v217 = vpack.c.b16 %v203, %v202
    %v218 = vpack.c.b16 %v205, %v204
    %v219 = vpack.c.b16 %v207, %v206
    %v220 = vpack.c.b16 %v209, %v208
    %v221 = vpack.c.b16 %v211, %v210
    %v222 = vpack.c.b16 %v213, %v212
    %v223 = vpack.c.b16 %v215, %v214
    %232 = vmatpush.bf16.msra.mxu0 %v223
    %233 = vmatpush.bf16.msra.mxu0 %v222
    %234 = vmatpush.bf16.msra.mxu0 %v221
    %235 = vmatpush.bf16.msra.mxu0 %v220
    %236 = vmatpush.bf16.msra.mxu0 %v219
    %237 = vmatpush.bf16.msra.mxu0 %v218
    %238 = vmatpush.bf16.msra.mxu0 %v217
    %239 = vmatpush.bf16.msra.mxu0 %v216
    %240 = vmatmul.bf16.gmra.mxu0 %v156
    %v241 = vpop.f32.mrf.mxu0
    %v242 = vadd.f32 %v182, %v241
    %v243 = vpop.f32.mrf.mxu0
    %v244 = vadd.f32 %v182, %v243
    %245 = vmatmul.bf16.gmra.mxu0 %v157
    %v246 = vpop.f32.mrf.mxu0
    %v247 = vadd.f32 %v182, %v246
    %v248 = vpop.f32.mrf.mxu0
    %v249 = vadd.f32 %v182, %v248
    %250 = vmatmul.bf16.gmra.mxu0 %v158
    %v251 = vpop.f32.mrf.mxu0
    %v252 = vadd.f32 %v182, %v251
    %v253 = vpop.f32.mrf.mxu0
    %v254 = vadd.f32 %v182, %v253
    %255 = vmatmul.bf16.gmra.mxu0 %v159
    %v256 = vpop.f32.mrf.mxu0
    %v257 = vadd.f32 %v182, %v256
    %v258 = vpop.f32.mrf.mxu0
    %v259 = vadd.f32 %v182, %v258
    %260 = vmatmul.bf16.gmra.mxu0 %v160
    %v261 = vpop.f32.mrf.mxu0
    %v262 = vadd.f32 %v182, %v261
    %v263 = vpop.f32.mrf.mxu0
    %v264 = vadd.f32 %v182, %v263
    %265 = vmatmul.bf16.gmra.mxu0 %v161
    %v266 = vpop.f32.mrf.mxu0
    %v267 = vadd.f32 %v182, %v266
    %v268 = vpop.f32.mrf.mxu0
    %v269 = vadd.f32 %v182, %v268
    %270 = vmatmul.bf16.gmra.mxu0 %v162
    %v271 = vpop.f32.mrf.mxu0
    %v272 = vadd.f32 %v182, %v271
    %v273 = vpop.f32.mrf.mxu0
    %v274 = vadd.f32 %v182, %v273
    %275 = vmatmul.bf16.gmra.mxu0 %v163
    %v276 = vpop.f32.mrf.mxu0
    %v277 = vadd.f32 %v182, %v276
    %v278 = vpop.f32.mrf.mxu0
    %v279 = vadd.f32 %v182, %v278
    %280 = vdwg.mxu0
    %v281 = vpack.c.bf16 %v242, %v242
    %v282 = vpack.c.bf16 %v244, %v244
    %v283 = vpack.c.bf16 %v247, %v247
    %v284 = vpack.c.bf16 %v249, %v249
    %v285 = vpack.c.bf16 %v252, %v252
    %v286 = vpack.c.bf16 %v254, %v254
    %v287 = vpack.c.bf16 %v257, %v257
    %v288 = vpack.c.bf16 %v259, %v259
    %v289 = vpack.c.bf16 %v262, %v262
    %v290 = vpack.c.bf16 %v264, %v264
    %v291 = vpack.c.bf16 %v267, %v267
    %v292 = vpack.c.bf16 %v269, %v269
    %v293 = vpack.c.bf16 %v272, %v272
    %v294 = vpack.c.bf16 %v274, %v274
    %v295 = vpack.c.bf16 %v277, %v277
    %v296 = vpack.c.bf16 %v279, %v279
    %297 = vst [vmem:[#allocation2] sm:$0xf] %v281
    %298 = vst [vmem:[#allocation2 + $0x4] sm:$0xf] %v282
    %299 = vst [vmem:[#allocation2 + $0x8] sm:$0xf] %v283
    %300 = vst [vmem:[#allocation2 + $0xc] sm:$0xf] %v284
    %301 = vst [vmem:[#allocation2 + $0x10] sm:$0xf] %v285
    %302 = vst [vmem:[#allocation2 + $0x14] sm:$0xf] %v286
    %303 = vst [vmem:[#allocation2 + $0x18] sm:$0xf] %v287
    %304 = vst [vmem:[#allocation2 + $0x1c] sm:$0xf] %v288
    %305 = vst [vmem:[#allocation2 + $0x20] sm:$0xf] %v289
    %306 = vst [vmem:[#allocation2 + $0x24] sm:$0xf] %v290
    %307 = vst [vmem:[#allocation2 + $0x28] sm:$0xf] %v291
    %308 = vst [vmem:[#allocation2 + $0x2c] sm:$0xf] %v292
    %309 = vst [vmem:[#allocation2 + $0x30] sm:$0xf] %v293
    %310 = vst [vmem:[#allocation2 + $0x34] sm:$0xf] %v294
    %311 = vst [vmem:[#allocation2 + $0x38] sm:$0xf] %v295
    %312 = vst [vmem:[#allocation2 + $0x3c] sm:$0xf] %v296
    // Predicated region
    $region22: #{tpu_custom_call.1} parent=1 // pred_check
      _
    $region23: #{tpu_custom_call.1} parent=1 // pred_check_branch
      %314 = sbr.rel (0) target = $region25
    $region24: #{tpu_custom_call.1} parent=1 // pred_region
      %316 = vsyncadd [#allocation3], 0
      %s317 = sshll.u32 [#allocation2], 4
      %s318 = int_to_ptr.vmem [resolvable:$true] %s317
      %s319 = sshll.u32 %s5, 4
      %s320 = int_to_ptr.hbm [resolvable:$true] %s319
      %325 = dma.vmem_to_hbm [thread:$0]  %s318, 1024, %s320, [#allocation3], 64, 64, 4
    $region25: #{tpu_custom_call.1} parent=1 // pred_fallthru
      _
    // Predicated region
    $region26: #{tpu_custom_call.1} parent=1 // pred_check
      _
    $region27: #{tpu_custom_call.1} parent=1 // pred_check_branch
      %327 = sbr.rel (0) target = $region29
    $region28: #{tpu_custom_call.1} parent=1 // pred_region
      %329 = dma.done [#allocation3], 1024
    $region29: #{tpu_custom_call.1} parent=1 // pred_fallthru
      _
    %330 = vsyncpa [#allocation3], 1

// kernel: tpu_custom_call.1
$region0: #{tpu_custom_call.1}
  #allocation0 [shape = 'u32[]', space=smem, size = 0x4, offset = 0x4, fixed_abs, tag = 'smem constant byte address 0x4 - core index']
  #allocation1 [shape = 'u32[72,128]{1,0:T(1,128)}', space=vmem, size = 0x9000, scoped, tag = 'internal scratch']
  %s0 = inlined_call_operand.vmem [shape: f32[128,32], index: 0, kind: input, shape index: {}]
  %s1 = inlined_call_operand.vmem [shape: bf16[32,128], index: 1, kind: input, shape index: {}]
  %s2 = inlined_call_operand.vmem [shape: f32[1,128], index: 2, kind: input, shape index: {}]
  %s3 = inlined_call_operand.vmem [shape: bf16[128,128], index: 3, kind: input, shape index: {}]
  %s4 = inlined_call_operand.vmem [shape: f32[1,128], index: 4, kind: input, shape index: {}]
  %s5 = inlined_call_operand.hbm [shape: bf16[128,128], index: 5, kind: output, shape index: {}]
  %s6 = sld [smem:[#allocation0]]
  $region30: #{tpu_custom_call.1} parent=0
    _
  %s8 = ssub.s32 1, %s6
  %s9 = scalar_select 0, %s8, %s6
  $region1: #{tpu_custom_call.1} parent=0
    #allocation2 [shape = 'u8[32768]{0}', space=vmem, size = 0x8000, scoped, tag = 'output window, operand 0, single buffered']
    #allocation3 [shape = 's32[1]{0}', space=sflag, size = 0x4, scoped, tag = 'scoped memory for tpu_custom_call.1']
    %10 = vsyncpa [#allocation3], 0
    // Predicated region
    $region2: #{tpu_custom_call.1} parent=1 // pred_check
      _
    $region3: #{tpu_custom_call.1} parent=1 // pred_check_branch
      %12 = sbr.rel (0) target = $region5
    $region4: #{tpu_custom_call.1} parent=1 // pred_region
      _
    $region5: #{tpu_custom_call.1} parent=1 // pred_fallthru
      _
    // Predicated region
    $region6: #{tpu_custom_call.1} parent=1 // pred_check
      _
    $region7: #{tpu_custom_call.1} parent=1 // pred_check_branch
      %14 = sbr.rel (0) target = $region9
    $region8: #{tpu_custom_call.1} parent=1 // pred_region
      _
    $region9: #{tpu_custom_call.1} parent=1 // pred_fallthru
      _
    // Predicated region
    $region10: #{tpu_custom_call.1} parent=1 // pred_check
      _
    $region11: #{tpu_custom_call.1} parent=1 // pred_check_branch
      %16 = sbr.rel (0) target = $region13
    $region12: #{tpu_custom_call.1} parent=1 // pred_region
      _
    $region13: #{tpu_custom_call.1} parent=1 // pred_fallthru
      _
    // Predicated region
    $region14: #{tpu_custom_call.1} parent=1 // pred_check
      _
    $region15: #{tpu_custom_call.1} parent=1 // pred_check_branch
      %18 = sbr.rel (0) target = $region17
    $region16: #{tpu_custom_call.1} parent=1 // pred_region
      _
    $region17: #{tpu_custom_call.1} parent=1 // pred_fallthru
      _
    // Predicated region
    $region18: #{tpu_custom_call.1} parent=1 // pred_check
      _
    $region19: #{tpu_custom_call.1} parent=1 // pred_check_branch
      %20 = sbr.rel (0) target = $region21
    $region20: #{tpu_custom_call.1} parent=1 // pred_region
      _
    $region21: #{tpu_custom_call.1} parent=1 // pred_fallthru
      _
    %v22 = vld [vmem:[%s0] sm:$0xff]
    %v23 = vld [vmem:[%s0 + $0x8] sm:$0xff]
    %v24 = vld [vmem:[%s0 + $0x10] sm:$0xff]
    %v25 = vld [vmem:[%s0 + $0x18] sm:$0xff]
    %v26 = vld [vmem:[%s0 + $0x20] sm:$0xff]
    %v27 = vld [vmem:[%s0 + $0x28] sm:$0xff]
    %v28 = vld [vmem:[%s0 + $0x30] sm:$0xff]
    %v29 = vld [vmem:[%s0 + $0x38] sm:$0xff]
    %v30 = vld [vmem:[%s0 + $0x40] sm:$0xff]
    %v31 = vld [vmem:[%s0 + $0x48] sm:$0xff]
    %v32 = vld [vmem:[%s0 + $0x50] sm:$0xff]
    %v33 = vld [vmem:[%s0 + $0x58] sm:$0xff]
    %v34 = vld [vmem:[%s0 + $0x60] sm:$0xff]
    %v35 = vld [vmem:[%s0 + $0x68] sm:$0xff]
    %v36 = vld [vmem:[%s0 + $0x70] sm:$0xff]
    %v37 = vld [vmem:[%s0 + $0x78] sm:$0xff]
    %v38 = vpack.c.bf16 %v23, %v22
    %v39 = vpack.c.bf16 %v25, %v24
    %v40 = vpack.c.bf16 %v27, %v26
    %v41 = vpack.c.bf16 %v29, %v28
    %v42 = vpack.c.bf16 %v31, %v30
    %v43 = vpack.c.bf16 %v33, %v32
    %v44 = vpack.c.bf16 %v35, %v34
    %v45 = vpack.c.bf16 %v37, %v36
    %v46 = vld [vmem:[%s1] sm:$0xf]
    %v47 = vld [vmem:[%s1 + $0x4] sm:$0xf]
    %v48 = vld [vmem:[%s1 + $0x8] sm:$0xf]
    %v49 = vld [vmem:[%s1 + $0xc] sm:$0xf]
    %v50 = vld [vmem:[%s2] sm:$0x1]
    %v52 = vperm.slane %v50, 0
    %v58 = vunpack.c.l.b16 %v46
    %v59 = vunpack.c.l.b16 %v47
    %v60 = vunpack.c.l.b16 %v48
    %v61 = vunpack.c.l.b16 %v49
    %v62 = vpack.c.b16 %v59, %v58
    %v63 = vpack.c.b16 %v61, %v60
    %vm66 = vcmask 261120
    %v68 = vsel %vm66, %v38, 0
    %v71 = vsel %vm66, %v39, 0
    %v74 = vsel %vm66, %v40, 0
    %v77 = vsel %vm66, %v41, 0
    %v80 = vsel %vm66, %v42, 0
    %v83 = vsel %vm66, %v43, 0
    %v86 = vsel %vm66, %v44, 0
    %v89 = vsel %vm66, %v45, 0
    %91 = vmatpush.bf16.msra.mxu0 0
    %92 = vmatpush.bf16.msra.mxu0 0
    %93 = vmatpush.bf16.msra.mxu0 0
    %94 = vmatpush.bf16.msra.mxu0 0
    %95 = vmatpush.bf16.msra.mxu0 0
    %96 = vmatpush.bf16.msra.mxu0 0
    %97 = vmatpush.bf16.msra.mxu0 %v63
    %98 = vmatpush.bf16.msra.mxu0 %v62
    %99 = vmatmul.bf16.gmra.mxu0 %v68
    %v100 = vpop.f32.mrf.mxu0
    %v101 = vadd.f32 %v52, %v100
    %v102 = vpop.f32.mrf.mxu0
    %v103 = vadd.f32 %v52, %v102
    %104 = vmatmul.bf16.gmra.mxu0 %v71
    %v105 = vpop.f32.mrf.mxu0
    %v106 = vadd.f32 %v52, %v105
    %v107 = vpop.f32.mrf.mxu0
    %v108 = vadd.f32 %v52, %v107
    %109 = vmatmul.bf16.gmra.mxu0 %v74
    %v110 = vpop.f32.mrf.mxu0
    %v111 = vadd.f32 %v52, %v110
    %v112 = vpop.f32.mrf.mxu0
    %v113 = vadd.f32 %v52, %v112
    %114 = vmatmul.bf16.gmra.mxu0 %v77
    %v115 = vpop.f32.mrf.mxu0
    %v116 = vadd.f32 %v52, %v115
    %v117 = vpop.f32.mrf.mxu0
    %v118 = vadd.f32 %v52, %v117
    %119 = vmatmul.bf16.gmra.mxu0 %v80
    %v120 = vpop.f32.mrf.mxu0
    %v121 = vadd.f32 %v52, %v120
    %v122 = vpop.f32.mrf.mxu0
    %v123 = vadd.f32 %v52, %v122
    %124 = vmatmul.bf16.gmra.mxu0 %v83
    %v125 = vpop.f32.mrf.mxu0
    %v126 = vadd.f32 %v52, %v125
    %v127 = vpop.f32.mrf.mxu0
    %v128 = vadd.f32 %v52, %v127
    %129 = vmatmul.bf16.gmra.mxu0 %v86
    %v130 = vpop.f32.mrf.mxu0
    %v131 = vadd.f32 %v52, %v130
    %v132 = vpop.f32.mrf.mxu0
    %v133 = vadd.f32 %v52, %v132
    %134 = vmatmul.bf16.gmra.mxu0 %v89
    %v135 = vpop.f32.mrf.mxu0
    %v136 = vadd.f32 %v52, %v135
    %v137 = vpop.f32.mrf.mxu0
    %v138 = vadd.f32 %v52, %v137
    %139 = vdwg.mxu0
    %v140 = vmax.f32 %v101, 0.0
    %v141 = vmax.f32 %v103, 0.0
    %v142 = vmax.f32 %v106, 0.0
    %v143 = vmax.f32 %v108, 0.0
    %v144 = vmax.f32 %v111, 0.0
    %v145 = vmax.f32 %v113, 0.0
    %v146 = vmax.f32 %v116, 0.0
    %v147 = vmax.f32 %v118, 0.0
    %v148 = vmax.f32 %v121, 0.0
    %v149 = vmax.f32 %v123, 0.0
    %v150 = vmax.f32 %v126, 0.0
    %v151 = vmax.f32 %v128, 0.0
    %v152 = vmax.f32 %v131, 0.0
    %v153 = vmax.f32 %v133, 0.0
    %v154 = vmax.f32 %v136, 0.0
    %v155 = vmax.f32 %v138, 0.0
    %v156 = vpack.c.bf16 %v141, %v140
    %v157 = vpack.c.bf16 %v143, %v142
    %v158 = vpack.c.bf16 %v145, %v144
    %v159 = vpack.c.bf16 %v147, %v146
    %v160 = vpack.c.bf16 %v149, %v148
    %v161 = vpack.c.bf16 %v151, %v150
    %v162 = vpack.c.bf16 %v153, %v152
    %v163 = vpack.c.bf16 %v155, %v154
    %v164 = vld [vmem:[%s3] sm:$0xf]
    %v165 = vld [vmem:[%s3 + $0x4] sm:$0xf]
    %v166 = vld [vmem:[%s3 + $0x8] sm:$0xf]
    %v167 = vld [vmem:[%s3 + $0xc] sm:$0xf]
    %v168 = vld [vmem:[%s3 + $0x10] sm:$0xf]
    %v169 = vld [vmem:[%s3 + $0x14] sm:$0xf]
    %v170 = vld [vmem:[%s3 + $0x18] sm:$0xf]
    %v171 = vld [vmem:[%s3 + $0x1c] sm:$0xf]
    %v172 = vld [vmem:[%s3 + $0x20] sm:$0xf]
    %v173 = vld [vmem:[%s3 + $0x24] sm:$0xf]
    %v174 = vld [vmem:[%s3 + $0x28] sm:$0xf]
    %v175 = vld [vmem:[%s3 + $0x2c] sm:$0xf]
    %v176 = vld [vmem:[%s3 + $0x30] sm:$0xf]
    %v177 = vld [vmem:[%s3 + $0x34] sm:$0xf]
    %v178 = vld [vmem:[%s3 + $0x38] sm:$0xf]
    %v179 = vld [vmem:[%s3 + $0x3c] sm:$0xf]
    %v180 = vld [vmem:[%s4] sm:$0x1]
    %v182 = vperm.slane %v180, 0
    %v200 = vunpack.c.l.b16 %v164
    %v201 = vunpack.c.l.b16 %v165
    %v202 = vunpack.c.l.b16 %v166
    %v203 = vunpack.c.l.b16 %v167
    %v204 = vunpack.c.l.b16 %v168
    %v205 = vunpack.c.l.b16 %v169
    %v206 = vunpack.c.l.b16 %v170
    %v207 = vunpack.c.l.b16 %v171
    %v208 = vunpack.c.l.b16 %v172
    %v209 = vunpack.c.l.b16 %v173
    %v210 = vunpack.c.l.b16 %v174
    %v211 = vunpack.c.l.b16 %v175
    %v212 = vunpack.c.l.b16 %v176
    %v213 = vunpack.c.l.b16 %v177
    %v214 = vunpack.c.l.b16 %v178
    %v215 = vunpack.c.l.b16 %v179
    %v216 = vpack.c.b16 %v201, %v200
    %v217 = vpack.c.b16 %v203, %v202
    %v218 = vpack.c.b16 %v205, %v204
    %v219 = vpack.c.b16 %v207, %v206
    %v220 = vpack.c.b16 %v209, %v208
    %v221 = vpack.c.b16 %v211, %v210
    %v222 = vpack.c.b16 %v213, %v212
    %v223 = vpack.c.b16 %v215, %v214
    %232 = vmatpush.bf16.msra.mxu0 %v223
    %233 = vmatpush.bf16.msra.mxu0 %v222
    %234 = vmatpush.bf16.msra.mxu0 %v221
    %235 = vmatpush.bf16.msra.mxu0 %v220
    %236 = vmatpush.bf16.msra.mxu0 %v219
    %237 = vmatpush.bf16.msra.mxu0 %v218
    %238 = vmatpush.bf16.msra.mxu0 %v217
    %239 = vmatpush.bf16.msra.mxu0 %v216
    %240 = vmatmul.bf16.gmra.mxu0 %v156
    %v241 = vpop.f32.mrf.mxu0
    %v242 = vadd.f32 %v182, %v241
    %v243 = vpop.f32.mrf.mxu0
    %v244 = vadd.f32 %v182, %v243
    %245 = vmatmul.bf16.gmra.mxu0 %v157
    %v246 = vpop.f32.mrf.mxu0
    %v247 = vadd.f32 %v182, %v246
    %v248 = vpop.f32.mrf.mxu0
    %v249 = vadd.f32 %v182, %v248
    %250 = vmatmul.bf16.gmra.mxu0 %v158
    %v251 = vpop.f32.mrf.mxu0
    %v252 = vadd.f32 %v182, %v251
    %v253 = vpop.f32.mrf.mxu0
    %v254 = vadd.f32 %v182, %v253
    %255 = vmatmul.bf16.gmra.mxu0 %v159
    %v256 = vpop.f32.mrf.mxu0
    %v257 = vadd.f32 %v182, %v256
    %v258 = vpop.f32.mrf.mxu0
    %v259 = vadd.f32 %v182, %v258
    %260 = vmatmul.bf16.gmra.mxu0 %v160
    %v261 = vpop.f32.mrf.mxu0
    %v262 = vadd.f32 %v182, %v261
    %v263 = vpop.f32.mrf.mxu0
    %v264 = vadd.f32 %v182, %v263
    %265 = vmatmul.bf16.gmra.mxu0 %v161
    %v266 = vpop.f32.mrf.mxu0
    %v267 = vadd.f32 %v182, %v266
    %v268 = vpop.f32.mrf.mxu0
    %v269 = vadd.f32 %v182, %v268
    %270 = vmatmul.bf16.gmra.mxu0 %v162
    %v271 = vpop.f32.mrf.mxu0
    %v272 = vadd.f32 %v182, %v271
    %v273 = vpop.f32.mrf.mxu0
    %v274 = vadd.f32 %v182, %v273
    %275 = vmatmul.bf16.gmra.mxu0 %v163
    %v276 = vpop.f32.mrf.mxu0
    %v277 = vadd.f32 %v182, %v276
    %v278 = vpop.f32.mrf.mxu0
    %v279 = vadd.f32 %v182, %v278
    %280 = vdwg.mxu0
    %v281 = vpack.c.bf16 %v242, %v242
    %v282 = vpack.c.bf16 %v244, %v244
    %v283 = vpack.c.bf16 %v247, %v247
    %v284 = vpack.c.bf16 %v249, %v249
    %v285 = vpack.c.bf16 %v252, %v252
    %v286 = vpack.c.bf16 %v254, %v254
    %v287 = vpack.c.bf16 %v257, %v257
    %v288 = vpack.c.bf16 %v259, %v259
    %v289 = vpack.c.bf16 %v262, %v262
    %v290 = vpack.c.bf16 %v264, %v264
    %v291 = vpack.c.bf16 %v267, %v267
    %v292 = vpack.c.bf16 %v269, %v269
    %v293 = vpack.c.bf16 %v272, %v272
    %v294 = vpack.c.bf16 %v274, %v274
    %v295 = vpack.c.bf16 %v277, %v277
    %v296 = vpack.c.bf16 %v279, %v279
    %297 = vst [vmem:[#allocation2] sm:$0xf] %v281
    %298 = vst [vmem:[#allocation2 + $0x4] sm:$0xf] %v282
    %299 = vst [vmem:[#allocation2 + $0x8] sm:$0xf] %v283
    %300 = vst [vmem:[#allocation2 + $0xc] sm:$0xf] %v284
    %301 = vst [vmem:[#allocation2 + $0x10] sm:$0xf] %v285
    %302 = vst [vmem:[#allocation2 + $0x14] sm:$0xf] %v286
    %303 = vst [vmem:[#allocation2 + $0x18] sm:$0xf] %v287
    %304 = vst [vmem:[#allocation2 + $0x1c] sm:$0xf] %v288
    %305 = vst [vmem:[#allocation2 + $0x20] sm:$0xf] %v289
    %306 = vst [vmem:[#allocation2 + $0x24] sm:$0xf] %v290
    %307 = vst [vmem:[#allocation2 + $0x28] sm:$0xf] %v291
    %308 = vst [vmem:[#allocation2 + $0x2c] sm:$0xf] %v292
    %309 = vst [vmem:[#allocation2 + $0x30] sm:$0xf] %v293
    %310 = vst [vmem:[#allocation2 + $0x34] sm:$0xf] %v294
    %311 = vst [vmem:[#allocation2 + $0x38] sm:$0xf] %v295
    %312 = vst [vmem:[#allocation2 + $0x3c] sm:$0xf] %v296
    // Predicated region
    $region22: #{tpu_custom_call.1} parent=1 // pred_check
      _
    $region23: #{tpu_custom_call.1} parent=1 // pred_check_branch
      %314 = sbr.rel (0) target = $region25
    $region24: #{tpu_custom_call.1} parent=1 // pred_region
      %316 = vsyncadd [#allocation3], 0
      %s317 = sshll.u32 [#allocation2], 4
      %s318 = int_to_ptr.vmem [resolvable:$true] %s317
      %s319 = sshll.u32 %s5, 4
      %s320 = int_to_ptr.hbm [resolvable:$true] %s319
      %325 = dma.vmem_to_hbm [thread:$0]  %s318, 1024, %s320, [#allocation3], 64, 64, 4
    $region25: #{tpu_custom_call.1} parent=1 // pred_fallthru
      _
    // Predicated region
    $region26: #{tpu_custom_call.1} parent=1 // pred_check
      _
    $region27: #{tpu_custom_call.1} parent=1 // pred_check_branch
      %327 = sbr.rel (0) target = $region29
    $region28: #{tpu_custom_call.1} parent=1 // pred_region
      %329 = dma.done [#allocation3], 1024
    $region29: #{tpu_custom_call.1} parent=1 // pred_fallthru
      _
    %330 = vsyncpa [#allocation3], 1

</llo_original>
